<compile_context>
chip_gen: v5e
topology: v5e:2x2
jax: 0.10.0
libtpu: 0.0.40
codegen_flags: <defaults>
</compile_context>

<pallas_src>
import functools

import jax
import jax.numpy as jnp
from jax.experimental import pallas as pl
from jax.experimental.pallas import tpu as pltpu


def _round_up(x, m):
    return ((x + m - 1) // m) * m


# --------------------------------------------------------------------------------------
# Kernel
# --------------------------------------------------------------------------------------
def _context_gate2_kernel(
    prev_ref, dec_ref, a1_ref, a2_ref,             # activations (TB, feat)
    wp_ref, wd_ref, wa1_ref, wa2_ref, b_ref,       # fused block weights / bias
    out_ref,                                       # (TB, N_pad) fused output slab
    *, gate_cols,
):
    f32 = jnp.float32
    # One fused contraction accumulated over the four input streams (MXU, f32 acc).
    acc = jnp.dot(prev_ref[...], wp_ref[...], preferred_element_type=f32)
    acc = acc + jnp.dot(dec_ref[...], wd_ref[...], preferred_element_type=f32)
    acc = acc + jnp.dot(a1_ref[...], wa1_ref[...], preferred_element_type=f32)
    acc = acc + jnp.dot(a2_ref[...], wa2_ref[...], preferred_element_type=f32)
    acc = acc + b_ref[...]
    # sigmoid only on the gate columns [0, 2*O); the rest are plain linear outputs.
    col = jax.lax.broadcasted_iota(jnp.int32, acc.shape, 1)
    out = jnp.where(col < gate_cols, jax.nn.sigmoid(acc), acc)
    # Single lane-dense store (N_pad is a multiple of 128 => unmasked vst).
    out_ref[...] = out.astype(out_ref.dtype)


# --------------------------------------------------------------------------------------
# One-time weight preparation (hoisted out of the hot path)
# --------------------------------------------------------------------------------------
def prepare_context_gate2_weights(params, embeddings_size, decoder_size, dtype=jnp.float32):
    """Build the block-structured fused weights once.

    params: PyTorch-convention weights:
      gate_w     (O, E+D+A1), gate_b     (O,)
      source1_w  (O, A1),     source1_b  (O,)
      source2_w  (O, A2),     source2_b  (O,)
      target_w   (O, E+D),    target_b   (O,)
    """
    E, D = embeddings_size, decoder_size
    O = params["gate_b"].shape[0]
    A1 = params["source1_w"].shape[1]
    A2 = params["source2_w"].shape[1]
    assert A1 == A2, "ContextGate2 requires attention1_size == attention2_size"
    A = A1
    assert params["gate_w"].shape == (O, E + D + A)
    assert params["target_w"].shape == (O, E + D)

    # Split / transpose to (in, out) once.
    wg_e = params["gate_w"][:, :E].T          # (E, O)
    wg_d = params["gate_w"][:, E:E + D].T     # (D, O)
    wg_a = params["gate_w"][:, E + D:].T      # (A, O)
    wt_e = params["target_w"][:, :E].T        # (E, O)
    wt_d = params["target_w"][:, E:].T        # (D, O)
    ws1 = params["source1_w"].T               # (A, O)
    ws2 = params["source2_w"].T               # (A, O)

    zE = jnp.zeros((E, O), dtype)
    zD = jnp.zeros((D, O), dtype)
    zA = jnp.zeros((A, O), dtype)

    # Output column blocks: [ z1 | z2 | proj_source1 | proj_source2 | proj_target ]
    w_prev = jnp.concatenate([wg_e, wg_e, zE, zE, wt_e], axis=1).astype(dtype)
    w_dec = jnp.concatenate([wg_d, wg_d, zD, zD, wt_d], axis=1).astype(dtype)
    w_a1 = jnp.concatenate([wg_a, zA, ws1, zA, zA], axis=1).astype(dtype)
    w_a2 = jnp.concatenate([zA, wg_a, zA, ws2, zA], axis=1).astype(dtype)
    bias = jnp.concatenate(
        [params["gate_b"], params["gate_b"],
         params["source1_b"], params["source2_b"], params["target_b"]]
    ).astype(jnp.float32)

    # Pad the fused output width to a multiple of 128 (lane-dense, unmasked stores).
    n = 5 * O
    n_pad = _round_up(n, 128)
    pad = n_pad - n
    if pad:
        w_prev = jnp.pad(w_prev, ((0, 0), (0, pad)))
        w_dec = jnp.pad(w_dec, ((0, 0), (0, pad)))
        w_a1 = jnp.pad(w_a1, ((0, 0), (0, pad)))
        w_a2 = jnp.pad(w_a2, ((0, 0), (0, pad)))
        bias = jnp.pad(bias, (0, pad))
    bias = bias.reshape(1, n_pad)

    return {
        "w_prev": w_prev, "w_dec": w_dec, "w_a1": w_a1, "w_a2": w_a2,
        "bias": bias, "output_size": O, "n_pad": n_pad,
    }


# --------------------------------------------------------------------------------------
# Forward pass
# --------------------------------------------------------------------------------------
def context_gate2(prev_emb, dec_state, attn1_state, attn2_state, fused, *, block_batch=256):
    """JAX/Pallas equivalent of ContextGate2.forward using pre-fused weights."""
    B, E = prev_emb.shape
    D = dec_state.shape[1]
    A = attn1_state.shape[1]
    assert attn2_state.shape[1] == A, "attention1_size must equal attention2_size"
    O = fused["output_size"]
    n_pad = fused["n_pad"]
    dtype = prev_emb.dtype

    # Batch tiling: TB multiple of 8 (sublanes), pad B up to a multiple of TB.
    tb = min(block_batch, _round_up(B, 8))
    bp = _round_up(B, tb)
    if bp != B:
        pad_rows = ((0, bp - B), (0, 0))
        prev_emb = jnp.pad(prev_emb, pad_rows)
        dec_state = jnp.pad(dec_state, pad_rows)
        attn1_state = jnp.pad(attn1_state, pad_rows)
        attn2_state = jnp.pad(attn2_state, pad_rows)

    grid = (bp // tb,)

    def act_spec(feat):
        return pl.BlockSpec((tb, feat), lambda i: (i, 0))

    def weight_spec(feat):
        # Same block for every grid step -> stays resident in VMEM (no re-DMA).
        return pl.BlockSpec((feat, n_pad), lambda i: (0, 0))

    kernel = functools.partial(_context_gate2_kernel, gate_cols=2 * O)

    k_in = E + D + 2 * A
    itemsize = jnp.dtype(dtype).itemsize
    cost = pl.CostEstimate(
        flops=2 * bp * k_in * n_pad,
        transcendentals=bp * n_pad,
        bytes_accessed=itemsize * (bp * k_in + k_in * n_pad + bp * n_pad) + 4 * n_pad,
    )

    out = pl.pallas_call(
        kernel,
        out_shape=jax.ShapeDtypeStruct((bp, n_pad), dtype),
        grid=grid,
        in_specs=[
            act_spec(E), act_spec(D), act_spec(A), act_spec(A),
            weight_spec(E), weight_spec(D), weight_spec(A), weight_spec(A),
            pl.BlockSpec((1, n_pad), lambda i: (0, 0)),
        ],
        out_specs=pl.BlockSpec((tb, n_pad), lambda i: (i, 0)),
        compiler_params=pltpu.CompilerParams(dimension_semantics=("parallel",)),
        cost_estimate=cost,
    )(prev_emb, dec_state, attn1_state, attn2_state,
      fused["w_prev"], fused["w_dec"], fused["w_a1"], fused["w_a2"], fused["bias"])

    # Slice the fused lane-dense slab back into the five module outputs.
    y = out[:B]
    z1 = y[:, 0 * O:1 * O]
    z2 = y[:, 1 * O:2 * O]
    proj_source1 = y[:, 2 * O:3 * O]
    proj_source2 = y[:, 3 * O:4 * O]
    proj_target = y[:, 4 * O:5 * O]
    return z1, z2, proj_source1, proj_source2, proj_target


# --------------------------------------------------------------------------------------
# Reference + demo
# --------------------------------------------------------------------------------------
def _init_linear(key, out_features, in_features):
    """Deterministic PyTorch-style uniform init: U(-1/sqrt(fan_in), 1/sqrt(fan_in))."""
    kw, kb = jax.random.split(key)
    bound = 1.0 / jnp.sqrt(jnp.float32(in_features))
    w = jax.random.uniform(kw, (out_features, in_features), jnp.float32, -bound, bound)
    b = jax.random.uniform(kb, (out_features,), jnp.float32, -bound, bound)
    return w, b


def _reference(prev_emb, dec_state, a1, a2, params):
    x1 = jnp.concatenate((prev_emb, dec_state, a1), axis=1)
    x2 = jnp.concatenate((prev_emb, dec_state, a2), axis=1)
    xt = jnp.concatenate((prev_emb, dec_state), axis=1)
    z1 = jax.nn.sigmoid(x1 @ params["gate_w"].T + params["gate_b"])
    z2 = jax.nn.sigmoid(x2 @ params["gate_w"].T + params["gate_b"])
    ps1 = a1 @ params["source1_w"].T + params["source1_b"]
    ps2 = a2 @ params["source2_w"].T + params["source2_b"]
    pt = xt @ params["target_w"].T + params["target_b"]
    return z1, z2, ps1, ps2, pt


if __name__ == "__main__":
    # Small shapes consistent with the module's forward.
    B = 8          # batch
    E = 16         # embeddings_size
    D = 32         # decoder_size
    A1 = A2 = 24   # attention sizes (must be equal — see note at top)
    O = 32         # output_size

    key = jax.random.PRNGKey(0)
    k_in, k_gate, k_s1, k_s2, k_t = jax.random.split(key, 5)
    ki = jax.random.split(k_in, 4)

    prev_emb = jax.random.normal(ki[0], (B, E), jnp.float32)
    dec_state = jax.random.normal(ki[1], (B, D), jnp.float32)
    attn1_state = jax.random.normal(ki[2], (B, A1), jnp.float32)
    attn2_state = jax.random.normal(ki[3], (B, A2), jnp.float32)

    gate_w, gate_b = _init_linear(k_gate, O, E + D + A1)
    s1_w, s1_b = _init_linear(k_s1, O, A1)
    s2_w, s2_b = _init_linear(k_s2, O, A2)
    t_w, t_b = _init_linear(k_t, O, E + D)
    params = {
        "gate_w": gate_w, "gate_b": gate_b,
        "source1_w": s1_w, "source1_b": s1_b,
        "source2_w": s2_w, "source2_b": s2_b,
        "target_w": t_w, "target_b": t_b,
    }

    # Fused weights built once (outside the per-step hot path).
    fused = prepare_context_gate2_weights(params, E, D, dtype=jnp.float32)

    outs = context_gate2(prev_emb, dec_state, attn1_state, attn2_state, fused)
    outs = jax.block_until_ready(outs)

    refs = _reference(prev_emb, dec_state, attn1_state, attn2_state, params)
    for o, r in zip(outs, refs):
        assert o.shape == r.shape and o.dtype == r.dtype
        assert jnp.max(jnp.abs(o - r)) < 1e-4, "mismatch vs pure-JAX reference"

    print("KERNEL_OK")
</pallas_src>

<mosaic_0001>
module attributes {stable_mosaic.version = 11 : i64} {
  func.func @_context_gate2_kernel(%arg0: i32, %arg1: memref<8x16xf32, #tpu.memory_space<vmem>>, %arg2: memref<8x32xf32, #tpu.memory_space<vmem>>, %arg3: memref<8x24xf32, #tpu.memory_space<vmem>>, %arg4: memref<8x24xf32, #tpu.memory_space<vmem>>, %arg5: memref<16x256xf32, #tpu.memory_space<vmem>>, %arg6: memref<32x256xf32, #tpu.memory_space<vmem>>, %arg7: memref<24x256xf32, #tpu.memory_space<vmem>>, %arg8: memref<24x256xf32, #tpu.memory_space<vmem>>, %arg9: memref<1x256xf32, #tpu.memory_space<vmem>>, %arg10: memref<8x256xf32, #tpu.memory_space<vmem>>) attributes {dimension_semantics = [#tpu.dimension_semantics<parallel>], iteration_bounds = array<i64: 1>, scalar_prefetch = 0 : i64, scratch_operands = 0 : i64, tpu.core_type = #tpu.core_type<tc>, window_params = [{transform_indices = @transform_0, window_bounds = array<i64: 8, 16>}, {transform_indices = @transform_1, window_bounds = array<i64: 8, 32>}, {transform_indices = @transform_2, window_bounds = array<i64: 8, 24>}, {transform_indices = @transform_3, window_bounds = array<i64: 8, 24>}, {pipeline_mode = #tpu.pipeline_mode<synchronous>, transform_indices = @transform_4, window_bounds = array<i64: 16, 256>}, {pipeline_mode = #tpu.pipeline_mode<synchronous>, transform_indices = @transform_5, window_bounds = array<i64: 32, 256>}, {pipeline_mode = #tpu.pipeline_mode<synchronous>, transform_indices = @transform_6, window_bounds = array<i64: 24, 256>}, {pipeline_mode = #tpu.pipeline_mode<synchronous>, transform_indices = @transform_7, window_bounds = array<i64: 24, 256>}, {pipeline_mode = #tpu.pipeline_mode<synchronous>, transform_indices = @transform_8, window_bounds = array<i64: 1, 256>}, {transform_indices = @transform_9, window_bounds = array<i64: 8, 256>}]} {
    %c0 = arith.constant 0 : index
    %c0_0 = arith.constant 0 : index
    %0 = vector.load %arg1[%c0, %c0_0] : memref<8x16xf32, #tpu.memory_space<vmem>>, vector<8x16xf32>
    %c0_1 = arith.constant 0 : index
    %c0_2 = arith.constant 0 : index
    %1 = vector.load %arg5[%c0_1, %c0_2] : memref<16x256xf32, #tpu.memory_space<vmem>>, vector<16x256xf32>
    %cst = arith.constant dense<0.000000e+00> : vector<8x256xf32>
    %2 = tpu.matmul %0, %1, %cst {dimension_numbers = #tpu.dot_dimension_numbers<[1], [0], [0], [1], [0, 0, 1, 1], [], []>} : vector<8x16xf32>, vector<16x256xf32>, vector<8x256xf32> -> vector<8x256xf32>
    %c0_3 = arith.constant 0 : index
    %c0_4 = arith.constant 0 : index
    %3 = vector.load %arg2[%c0_3, %c0_4] : memref<8x32xf32, #tpu.memory_space<vmem>>, vector<8x32xf32>
    %c0_5 = arith.constant 0 : index
    %c0_6 = arith.constant 0 : index
    %4 = vector.load %arg6[%c0_5, %c0_6] : memref<32x256xf32, #tpu.memory_space<vmem>>, vector<32x256xf32>
    %cst_7 = arith.constant dense<0.000000e+00> : vector<8x256xf32>
    %5 = tpu.matmul %3, %4, %cst_7 {dimension_numbers = #tpu.dot_dimension_numbers<[1], [0], [0], [1], [0, 0, 1, 1], [], []>} : vector<8x32xf32>, vector<32x256xf32>, vector<8x256xf32> -> vector<8x256xf32>
    %6 = arith.addf %2, %5 : vector<8x256xf32>
    %c0_8 = arith.constant 0 : index
    %c0_9 = arith.constant 0 : index
    %7 = vector.load %arg3[%c0_8, %c0_9] : memref<8x24xf32, #tpu.memory_space<vmem>>, vector<8x24xf32>
    %c0_10 = arith.constant 0 : index
    %c0_11 = arith.constant 0 : index
    %8 = vector.load %arg7[%c0_10, %c0_11] : memref<24x256xf32, #tpu.memory_space<vmem>>, vector<24x256xf32>
    %cst_12 = arith.constant dense<0.000000e+00> : vector<8x256xf32>
    %9 = tpu.matmul %7, %8, %cst_12 {dimension_numbers = #tpu.dot_dimension_numbers<[1], [0], [0], [1], [0, 0, 1, 1], [], []>} : vector<8x24xf32>, vector<24x256xf32>, vector<8x256xf32> -> vector<8x256xf32>
    %10 = arith.addf %6, %9 : vector<8x256xf32>
    %c0_13 = arith.constant 0 : index
    %c0_14 = arith.constant 0 : index
    %11 = vector.load %arg4[%c0_13, %c0_14] : memref<8x24xf32, #tpu.memory_space<vmem>>, vector<8x24xf32>
    %c0_15 = arith.constant 0 : index
    %c0_16 = arith.constant 0 : index
    %12 = vector.load %arg8[%c0_15, %c0_16] : memref<24x256xf32, #tpu.memory_space<vmem>>, vector<24x256xf32>
    %cst_17 = arith.constant dense<0.000000e+00> : vector<8x256xf32>
    %13 = tpu.matmul %11, %12, %cst_17 {dimension_numbers = #tpu.dot_dimension_numbers<[1], [0], [0], [1], [0, 0, 1, 1], [], []>} : vector<8x24xf32>, vector<24x256xf32>, vector<8x256xf32> -> vector<8x256xf32>
    %14 = arith.addf %10, %13 : vector<8x256xf32>
    %c0_18 = arith.constant 0 : index
    %c0_19 = arith.constant 0 : index
    %15 = vector.load %arg9[%c0_18, %c0_19] : memref<1x256xf32, #tpu.memory_space<vmem>>, vector<1x256xf32>
    %16 = vector.broadcast %15 : vector<1x256xf32> to vector<8x256xf32>
    %17 = arith.addf %14, %16 : vector<8x256xf32>
    %18 = tpu.iota {dimensions = array<i32: 1>} : vector<8x256xi32>
    %c64_i32 = arith.constant 64 : i32
    %19 = vector.broadcast %c64_i32 : i32 to vector<8x256xi32>
    %20 = arith.cmpi slt, %18, %19 : vector<8x256xi32>
    %21 = arith.negf %17 : vector<8x256xf32>
    %22 = math.exp %21 : vector<8x256xf32>
    %cst_20 = arith.constant 1.000000e+00 : f32
    %23 = vector.broadcast %cst_20 : f32 to vector<8x256xf32>
    %24 = arith.addf %23, %22 : vector<8x256xf32>
    %25 = arith.divf %23, %24 : vector<8x256xf32>
    %26 = arith.select %20, %25, %17 : vector<8x256xi1>, vector<8x256xf32>
    %c0_21 = arith.constant 0 : index
    %c0_22 = arith.constant 0 : index
    %27 = vector.load %arg10[%c0_21, %c0_22] : memref<8x256xf32, #tpu.memory_space<vmem>>, vector<8x256xf32>
    tpu.vector_store %arg10[%c0_21, %c0_22], %26 {strides = array<i32>} : memref<8x256xf32, #tpu.memory_space<vmem>>, vector<8x256xf32>,
    return
  }
  func.func @transform_0(%arg0: i32) -> (i32, i32) {
    %c0_i32 = arith.constant 0 : i32
    %c0_i32_0 = arith.constant 0 : i32
    return %arg0, %c0_i32 : i32, i32
  }
  func.func @transform_1(%arg0: i32) -> (i32, i32) {
    %c0_i32 = arith.constant 0 : i32
    %c0_i32_0 = arith.constant 0 : i32
    return %arg0, %c0_i32 : i32, i32
  }
  func.func @transform_2(%arg0: i32) -> (i32, i32) {
    %c0_i32 = arith.constant 0 : i32
    %c0_i32_0 = arith.constant 0 : i32
    return %arg0, %c0_i32 : i32, i32
  }
  func.func @transform_3(%arg0: i32) -> (i32, i32) {
    %c0_i32 = arith.constant 0 : i32
    %c0_i32_0 = arith.constant 0 : i32
    return %arg0, %c0_i32 : i32, i32
  }
  func.func @transform_4(%arg0: i32) -> (i32, i32) {
    %c0_i32 = arith.constant 0 : i32
    %c0_i32_0 = arith.constant 0 : i32
    %c0_i32_1 = arith.constant 0 : i32
    return %c0_i32, %c0_i32_0 : i32, i32
  }
  func.func @transform_5(%arg0: i32) -> (i32, i32) {
    %c0_i32 = arith.constant 0 : i32
    %c0_i32_0 = arith.constant 0 : i32
    %c0_i32_1 = arith.constant 0 : i32
    return %c0_i32, %c0_i32_0 : i32, i32
  }
  func.func @transform_6(%arg0: i32) -> (i32, i32) {
    %c0_i32 = arith.constant 0 : i32
    %c0_i32_0 = arith.constant 0 : i32
    %c0_i32_1 = arith.constant 0 : i32
    return %c0_i32, %c0_i32_0 : i32, i32
  }
  func.func @transform_7(%arg0: i32) -> (i32, i32) {
    %c0_i32 = arith.constant 0 : i32
    %c0_i32_0 = arith.constant 0 : i32
    %c0_i32_1 = arith.constant 0 : i32
    return %c0_i32, %c0_i32_0 : i32, i32
  }
  func.func @transform_8(%arg0: i32) -> (i32, i32) {
    %c0_i32 = arith.constant 0 : i32
    %c0_i32_0 = arith.constant 0 : i32
    %c0_i32_1 = arith.constant 0 : i32
    return %c0_i32, %c0_i32_0 : i32, i32
  }
  func.func @transform_9(%arg0: i32) -> (i32, i32) {
    %c0_i32 = arith.constant 0 : i32
    %c0_i32_0 = arith.constant 0 : i32
    return %arg0, %c0_i32 : i32, i32
  }
}

</mosaic_0001>

<llo_original>
// kernel: tpu_custom_call.1
$region0: #{tpu_custom_call.1}
  #allocation0 [shape = 'u32[]', space=smem, size = 0x4, offset = 0x4, fixed_abs, tag = 'smem constant byte address 0x4 - core index']
  #allocation1 [shape = 'u32[72,128]{1,0:T(1,128)}', space=vmem, size = 0x9000, scoped, tag = 'internal scratch']
  %s0 = inlined_call_operand.hbm [shape: f32[8,16], index: 0, kind: input, shape index: {}]
  %s1 = inlined_call_operand.hbm [shape: f32[8,32], index: 1, kind: input, shape index: {}]
  %s2 = inlined_call_operand.hbm [shape: f32[8,24], index: 2, kind: input, shape index: {}]
  %s3 = inlined_call_operand.hbm [shape: f32[8,24], index: 3, kind: input, shape index: {}]
  %s4 = inlined_call_operand.hbm [shape: f32[16,256], index: 4, kind: input, shape index: {}]
  %s5 = inlined_call_operand.hbm [shape: f32[32,256], index: 5, kind: input, shape index: {}]
  %s6 = inlined_call_operand.hbm [shape: f32[24,256], index: 6, kind: input, shape index: {}]
  %s7 = inlined_call_operand.hbm [shape: f32[24,256], index: 7, kind: input, shape index: {}]
  %s8 = inlined_call_operand.vmem [shape: f32[1,256], index: 8, kind: input, shape index: {}]
  %s9 = inlined_call_operand.hbm [shape: f32[8,256], index: 9, kind: output, shape index: {}]
  %s10 = sld [smem:[#allocation0]]
  $region78: #{tpu_custom_call.1} parent=0
    _
  %s12 = ssub.s32 1, %s10
  %s13 = scalar_select 0, %s12, %s10
  $region1: #{tpu_custom_call.1} parent=0
    #allocation2 [shape = 'u8[4096]{0}', space=vmem, size = 0x1000, scoped, tag = 'input window, operand 0, single buffered']
    #allocation3 [shape = 's32[1]{0}', space=sflag, size = 0x4, scoped, tag = 'scoped memory for tpu_custom_call.1']
    #allocation4 [shape = 's32[1]{0}', space=sflag, size = 0x4, scoped, tag = 'scoped memory for tpu_custom_call.1']
    #allocation5 [shape = 'u8[4096]{0}', space=vmem, size = 0x1000, scoped, tag = 'input window, operand 1, single buffered']
    #allocation6 [shape = 's32[1]{0}', space=sflag, size = 0x4, scoped, tag = 'scoped memory for tpu_custom_call.1']
    #allocation7 [shape = 'u8[4096]{0}', space=vmem, size = 0x1000, scoped, tag = 'input window, operand 2, single buffered']
    #allocation8 [shape = 'u8[4096]{0}', space=vmem, size = 0x1000, scoped, tag = 'input window, operand 3, single buffered']
    #allocation9 [shape = 's32[1]{0}', space=sflag, size = 0x4, scoped, tag = 'scoped memory for tpu_custom_call.1']
    #allocation10 [shape = 'u8[16384]{0}', space=vmem, size = 0x4000, scoped, tag = 'input window, operand 4, single buffered']
    #allocation11 [shape = 'u8[32768]{0}', space=vmem, size = 0x8000, scoped, tag = 'input window, operand 5, single buffered']
    #allocation12 [shape = 's32[1]{0}', space=sflag, size = 0x4, scoped, tag = 'scoped memory for tpu_custom_call.1']
    #allocation13 [shape = 'u8[24576]{0}', space=vmem, size = 0x6000, scoped, tag = 'input window, operand 6, single buffered']
    #allocation14 [shape = 'u8[24576]{0}', space=vmem, size = 0x6000, scoped, tag = 'input window, operand 7, single buffered']
    #allocation15 [shape = 's32[1]{0}', space=sflag, size = 0x4, scoped, tag = 'scoped memory for tpu_custom_call.1']
    #allocation16 [shape = 'u8[8192]{0}', space=vmem, size = 0x2000, scoped, tag = 'output window, operand 0, single buffered']
    %14 = vsyncpa [#allocation3], 0
    %15 = vsyncpa [#allocation6], 0
    %16 = vsyncpa [#allocation9], 0
    %17 = vsyncpa [#allocation12], 0
    %18 = vsyncpa [#allocation15], 0
    %19 = vsyncpa [#allocation4], 0
    // Predicated region
    $region2: #{tpu_custom_call.1} parent=1 // pred_check
      _
    $region3: #{tpu_custom_call.1} parent=1 // pred_check_branch
      %21 = sbr.rel (0) target = $region5
    $region4: #{tpu_custom_call.1} parent=1 // pred_region
      %23 = vsyncadd [#allocation3], 0
      %s25 = sshll.u32 %s0, 4
      %s26 = int_to_ptr.hbm [resolvable:$true] %s25
      %s27 = sshll.u32 [#allocation2], 4
      %s28 = int_to_ptr.vmem [resolvable:$true] %s27
      %30 = dma.hbm_to_vmem [thread:$0]  %s26, 128, %s28, [#allocation3]
    $region5: #{tpu_custom_call.1} parent=1 // pred_fallthru
      _
    // Predicated region
    $region6: #{tpu_custom_call.1} parent=1 // pred_check
      _
    $region7: #{tpu_custom_call.1} parent=1 // pred_check_branch
      %32 = sbr.rel (0) target = $region9
    $region8: #{tpu_custom_call.1} parent=1 // pred_region
      %34 = vsyncadd [#allocation6], 0
      %s36 = sshll.u32 %s1, 4
      %s37 = int_to_ptr.hbm [resolvable:$true] %s36
      %s38 = sshll.u32 [#allocation5], 4
      %s39 = int_to_ptr.vmem [resolvable:$true] %s38
      %41 = dma.hbm_to_vmem [thread:$0]  %s37, 128, %s39, [#allocation6]
    $region9: #{tpu_custom_call.1} parent=1 // pred_fallthru
      _
    // Predicated region
    $region10: #{tpu_custom_call.1} parent=1 // pred_check
      _
    $region11: #{tpu_custom_call.1} parent=1 // pred_check_branch
      %43 = sbr.rel (0) target = $region13
    $region12: #{tpu_custom_call.1} parent=1 // pred_region
      %45 = vsyncadd [#allocation6], 0
      %s47 = sshll.u32 %s2, 4
      %s48 = int_to_ptr.hbm [resolvable:$true] %s47
      %s49 = sshll.u32 [#allocation7], 4
      %s50 = int_to_ptr.vmem [resolvable:$true] %s49
      %52 = dma.hbm_to_vmem [thread:$0]  %s48, 128, %s50, [#allocation6]
    $region13: #{tpu_custom_call.1} parent=1 // pred_fallthru
      _
    // Predicated region
    $region14: #{tpu_custom_call.1} parent=1 // pred_check
      _
    $region15: #{tpu_custom_call.1} parent=1 // pred_check_branch
      %54 = sbr.rel (0) target = $region17
    $region16: #{tpu_custom_call.1} parent=1 // pred_region
      %56 = vsyncadd [#allocation9], 0
      %s58 = sshll.u32 %s3, 4
      %s59 = int_to_ptr.hbm [resolvable:$true] %s58
      %s60 = sshll.u32 [#allocation8], 4
      %s61 = int_to_ptr.vmem [resolvable:$true] %s60
      %63 = dma.hbm_to_vmem [thread:$0]  %s59, 128, %s61, [#allocation9]
    $region17: #{tpu_custom_call.1} parent=1 // pred_fallthru
      _
    // Predicated region
    $region18: #{tpu_custom_call.1} parent=1 // pred_check
      _
    $region19: #{tpu_custom_call.1} parent=1 // pred_check_branch
      %65 = sbr.rel (0) target = $region21
    $region20: #{tpu_custom_call.1} parent=1 // pred_region
      %67 = vsyncadd [#allocation9], 0
      %s68 = sshll.u32 %s4, 4
      %s69 = int_to_ptr.hbm [resolvable:$true] %s68
      %s70 = sshll.u32 [#allocation10], 4
      %s71 = int_to_ptr.vmem [resolvable:$true] %s70
      %76 = dma.hbm_to_vmem [thread:$0]  %s69, 512, %s71, [#allocation9], 256, 256, 16
    $region21: #{tpu_custom_call.1} parent=1 // pred_fallthru
      _
    // Predicated region
    $region22: #{tpu_custom_call.1} parent=1 // pred_check
      _
    $region23: #{tpu_custom_call.1} parent=1 // pred_check_branch
      %78 = sbr.rel (0) target = $region25
    $region24: #{tpu_custom_call.1} parent=1 // pred_region
      %80 = vsyncadd [#allocation12], 0
      %s81 = sshll.u32 %s5, 4
      %s82 = int_to_ptr.hbm [resolvable:$true] %s81
      %s83 = sshll.u32 [#allocation11], 4
      %s84 = int_to_ptr.vmem [resolvable:$true] %s83
      %89 = dma.hbm_to_vmem [thread:$0]  %s82, 1024, %s84, [#allocation12], 256, 256, 16
    $region25: #{tpu_custom_call.1} parent=1 // pred_fallthru
      _
    // Predicated region
    $region26: #{tpu_custom_call.1} parent=1 // pred_check
      _
    $region27: #{tpu_custom_call.1} parent=1 // pred_check_branch
      %91 = sbr.rel (0) target = $region29
    $region28: #{tpu_custom_call.1} parent=1 // pred_region
      %93 = vsyncadd [#allocation12], 0
      %s94 = sshll.u32 %s6, 4
      %s95 = int_to_ptr.hbm [resolvable:$true] %s94
      %s96 = sshll.u32 [#allocation13], 4
      %s97 = int_to_ptr.vmem [resolvable:$true] %s96
      %102 = dma.hbm_to_vmem [thread:$0]  %s95, 768, %s97, [#allocation12], 256, 256, 16
    $region29: #{tpu_custom_call.1} parent=1 // pred_fallthru
      _
    // Predicated region
    $region30: #{tpu_custom_call.1} parent=1 // pred_check
      _
    $region31: #{tpu_custom_call.1} parent=1 // pred_check_branch
      %104 = sbr.rel (0) target = $region33
    $region32: #{tpu_custom_call.1} parent=1 // pred_region
      %106 = vsyncadd [#allocation15], 0
      %s107 = sshll.u32 %s7, 4
      %s108 = int_to_ptr.hbm [resolvable:$true] %s107
      %s109 = sshll.u32 [#allocation14], 4
      %s110 = int_to_ptr.vmem [resolvable:$true] %s109
      %115 = dma.hbm_to_vmem [thread:$0]  %s108, 768, %s110, [#allocation15], 256, 256, 16
    $region33: #{tpu_custom_call.1} parent=1 // pred_fallthru
      _
    // Predicated region
    $region34: #{tpu_custom_call.1} parent=1 // pred_check
      _
    $region35: #{tpu_custom_call.1} parent=1 // pred_check_branch
      %117 = sbr.rel (0) target = $region37
    $region36: #{tpu_custom_call.1} parent=1 // pred_region
      _
    $region37: #{tpu_custom_call.1} parent=1 // pred_fallthru
      _
    // Predicated region
    $region38: #{tpu_custom_call.1} parent=1 // pred_check
      _
    $region39: #{tpu_custom_call.1} parent=1 // pred_check_branch
      %119 = sbr.rel (0) target = $region41
    $region40: #{tpu_custom_call.1} parent=1 // pred_region
      %121 = dma.done [#allocation3], 128
    $region41: #{tpu_custom_call.1} parent=1 // pred_fallthru
      _
    // Predicated region
    $region42: #{tpu_custom_call.1} parent=1 // pred_check
      _
    $region43: #{tpu_custom_call.1} parent=1 // pred_check_branch
      %123 = sbr.rel (0) target = $region45
    $region44: #{tpu_custom_call.1} parent=1 // pred_region
      %125 = dma.done [#allocation6], 128
    $region45: #{tpu_custom_call.1} parent=1 // pred_fallthru
      _
    // Predicated region
    $region46: #{tpu_custom_call.1} parent=1 // pred_check
      _
    $region47: #{tpu_custom_call.1} parent=1 // pred_check_branch
      %127 = sbr.rel (0) target = $region49
    $region48: #{tpu_custom_call.1} parent=1 // pred_region
      %129 = dma.done [#allocation6], 128
    $region49: #{tpu_custom_call.1} parent=1 // pred_fallthru
      _
    // Predicated region
    $region50: #{tpu_custom_call.1} parent=1 // pred_check
      _
    $region51: #{tpu_custom_call.1} parent=1 // pred_check_branch
      %131 = sbr.rel (0) target = $region53
    $region52: #{tpu_custom_call.1} parent=1 // pred_region
      %133 = dma.done [#allocation9], 128
    $region53: #{tpu_custom_call.1} parent=1 // pred_fallthru
      _
    // Predicated region
    $region54: #{tpu_custom_call.1} parent=1 // pred_check
      _
    $region55: #{tpu_custom_call.1} parent=1 // pred_check_branch
      %135 = sbr.rel (0) target = $region57
    $region56: #{tpu_custom_call.1} parent=1 // pred_region
      %137 = dma.done [#allocation9], 512
    $region57: #{tpu_custom_call.1} parent=1 // pred_fallthru
      _
    // Predicated region
    $region58: #{tpu_custom_call.1} parent=1 // pred_check
      _
    $region59: #{tpu_custom_call.1} parent=1 // pred_check_branch
      %139 = sbr.rel (0) target = $region61
    $region60: #{tpu_custom_call.1} parent=1 // pred_region
      %141 = dma.done [#allocation12], 1024
    $region61: #{tpu_custom_call.1} parent=1 // pred_fallthru
      _
    // Predicated region
    $region62: #{tpu_custom_call.1} parent=1 // pred_check
      _
    $region63: #{tpu_custom_call.1} parent=1 // pred_check_branch
      %143 = sbr.rel (0) target = $region65
    $region64: #{tpu_custom_call.1} parent=1 // pred_region
      %145 = dma.done [#allocation12], 768
    $region65: #{tpu_custom_call.1} parent=1 // pred_fallthru
      _
    // Predicated region
    $region66: #{tpu_custom_call.1} parent=1 // pred_check
      _
    $region67: #{tpu_custom_call.1} parent=1 // pred_check_branch
      %147 = sbr.rel (0) target = $region69
    $region68: #{tpu_custom_call.1} parent=1 // pred_region
      %149 = dma.done [#allocation15], 768
    $region69: #{tpu_custom_call.1} parent=1 // pred_fallthru
      _
    %v150 = vld [vmem:[#allocation2] sm:$0xff]
    %v151 = vld [vmem:[#allocation10] sm:$0xff]
    %v152 = vld [vmem:[#allocation10 + $0x8] sm:$0xff]
    %v153 = vld [vmem:[#allocation10 + $0x10] sm:$0xff]
    %v154 = vld [vmem:[#allocation10 + $0x18] sm:$0xff]
    %v155 = vld [vmem:[#allocation5] sm:$0xff]
    %v156 = vld [vmem:[#allocation11] sm:$0xff]
    %v157 = vld [vmem:[#allocation11 + $0x8] sm:$0xff]
    %v158 = vld [vmem:[#allocation11 + $0x10] sm:$0xff]
    %v159 = vld [vmem:[#allocation11 + $0x18] sm:$0xff]
    %v160 = vld [vmem:[#allocation11 + $0x20] sm:$0xff]
    %v161 = vld [vmem:[#allocation11 + $0x28] sm:$0xff]
    %v162 = vld [vmem:[#allocation11 + $0x30] sm:$0xff]
    %v163 = vld [vmem:[#allocation11 + $0x38] sm:$0xff]
    %vm164 = vcmask 261120
    %v166 = vsel %vm164, %v155, 0
    %168 = vmatpush.msra.mxu0 0.0
    %169 = vmatpush.msra.mxu0 0.0
    %170 = vmatpush.msra.mxu0 0.0
    %171 = vmatpush.msra.mxu0 0.0
    %172 = vmatpush.msra.mxu0 0.0
    %173 = vmatpush.msra.mxu0 0.0
    %174 = vmatpush.msra.mxu0 0.0
    %175 = vmatpush.msra.mxu0 0.0
    %176 = vmatpush.msra.mxu0 0.0
    %177 = vmatpush.msra.mxu0 0.0
    %178 = vmatpush.msra.mxu0 0.0
    %179 = vmatpush.msra.mxu0 0.0
    %180 = vmatpush.msra.mxu0 %v162
    %181 = vmatpush.msra.mxu0 %v160
    %182 = vmatpush.msra.mxu0 %v158
    %183 = vmatpush.msra.mxu0 %v156
    %184 = vmatmul.f32.gmra.mxu0 %v166
    %v185 = vpop.f32.mrf.mxu0
    %v186 = vadd.f32 0.0, %v185
    %187 = vdwg.mxu0
    %188 = vmatpush.msra.mxu0 0.0
    %189 = vmatpush.msra.mxu0 0.0
    %190 = vmatpush.msra.mxu0 0.0
    %191 = vmatpush.msra.mxu0 0.0
    %192 = vmatpush.msra.mxu0 0.0
    %193 = vmatpush.msra.mxu0 0.0
    %194 = vmatpush.msra.mxu0 0.0
    %195 = vmatpush.msra.mxu0 0.0
    %196 = vmatpush.msra.mxu0 0.0
    %197 = vmatpush.msra.mxu0 0.0
    %198 = vmatpush.msra.mxu0 0.0
    %199 = vmatpush.msra.mxu0 0.0
    %200 = vmatpush.msra.mxu0 %v163
    %201 = vmatpush.msra.mxu0 %v161
    %202 = vmatpush.msra.mxu0 %v159
    %203 = vmatpush.msra.mxu0 %v157
    %204 = vmatmul.f32.gmra.mxu0 %v166
    %v205 = vpop.f32.mrf.mxu0
    %v206 = vadd.f32 0.0, %v205
    %207 = vdwg.mxu0
    %vm208 = vcmask 130048
    %v210 = vsel %vm208, %v150, 0
    %212 = vmatpush.msra.mxu0 0.0
    %213 = vmatpush.msra.mxu0 0.0
    %214 = vmatpush.msra.mxu0 0.0
    %215 = vmatpush.msra.mxu0 0.0
    %216 = vmatpush.msra.mxu0 0.0
    %217 = vmatpush.msra.mxu0 0.0
    %218 = vmatpush.msra.mxu0 0.0
    %219 = vmatpush.msra.mxu0 0.0
    %220 = vmatpush.msra.mxu0 0.0
    %221 = vmatpush.msra.mxu0 0.0
    %222 = vmatpush.msra.mxu0 0.0
    %223 = vmatpush.msra.mxu0 0.0
    %224 = vmatpush.msra.mxu0 0.0
    %225 = vmatpush.msra.mxu0 0.0
    %226 = vmatpush.msra.mxu0 %v153
    %227 = vmatpush.msra.mxu0 %v151
    %228 = vmatmul.f32.gmra.mxu0 %v210
    %v229 = vpop.f32.mrf.mxu0
    %v230 = vadd.f32 %v186, %v229
    %231 = vdwg.mxu0
    %232 = vmatpush.msra.mxu0 0.0
    %233 = vmatpush.msra.mxu0 0.0
    %234 = vmatpush.msra.mxu0 0.0
    %235 = vmatpush.msra.mxu0 0.0
    %236 = vmatpush.msra.mxu0 0.0
    %237 = vmatpush.msra.mxu0 0.0
    %238 = vmatpush.msra.mxu0 0.0
    %239 = vmatpush.msra.mxu0 0.0
    %240 = vmatpush.msra.mxu0 0.0
    %241 = vmatpush.msra.mxu0 0.0
    %242 = vmatpush.msra.mxu0 0.0
    %243 = vmatpush.msra.mxu0 0.0
    %244 = vmatpush.msra.mxu0 0.0
    %245 = vmatpush.msra.mxu0 0.0
    %246 = vmatpush.msra.mxu0 %v154
    %247 = vmatpush.msra.mxu0 %v152
    %248 = vmatmul.f32.gmra.mxu0 %v210
    %v249 = vpop.f32.mrf.mxu0
    %v250 = vadd.f32 %v206, %v249
    %251 = vdwg.mxu0
    %v252 = vld [vmem:[#allocation7] sm:$0xff]
    %v253 = vld [vmem:[#allocation13] sm:$0xff]
    %v254 = vld [vmem:[#allocation13 + $0x8] sm:$0xff]
    %v255 = vld [vmem:[#allocation13 + $0x10] sm:$0xff]
    %v256 = vld [vmem:[#allocation13 + $0x18] sm:$0xff]
    %v257 = vld [vmem:[#allocation13 + $0x20] sm:$0xff]
    %v258 = vld [vmem:[#allocation13 + $0x28] sm:$0xff]
    %vm259 = vcmask 195584
    %v261 = vsel %vm259, %v252, 0
    %263 = vmatpush.msra.mxu0 0.0
    %264 = vmatpush.msra.mxu0 0.0
    %265 = vmatpush.msra.mxu0 0.0
    %266 = vmatpush.msra.mxu0 0.0
    %267 = vmatpush.msra.mxu0 0.0
    %268 = vmatpush.msra.mxu0 0.0
    %269 = vmatpush.msra.mxu0 0.0
    %270 = vmatpush.msra.mxu0 0.0
    %271 = vmatpush.msra.mxu0 0.0
    %272 = vmatpush.msra.mxu0 0.0
    %273 = vmatpush.msra.mxu0 0.0
    %274 = vmatpush.msra.mxu0 0.0
    %275 = vmatpush.msra.mxu0 0.0
    %276 = vmatpush.msra.mxu0 %v257
    %277 = vmatpush.msra.mxu0 %v255
    %278 = vmatpush.msra.mxu0 %v253
    %279 = vmatmul.f32.gmra.mxu0 %v261
    %v280 = vpop.f32.mrf.mxu0
    %v281 = vadd.f32 0.0, %v280
    %282 = vdwg.mxu0
    %283 = vmatpush.msra.mxu0 0.0
    %284 = vmatpush.msra.mxu0 0.0
    %285 = vmatpush.msra.mxu0 0.0
    %286 = vmatpush.msra.mxu0 0.0
    %287 = vmatpush.msra.mxu0 0.0
    %288 = vmatpush.msra.mxu0 0.0
    %289 = vmatpush.msra.mxu0 0.0
    %290 = vmatpush.msra.mxu0 0.0
    %291 = vmatpush.msra.mxu0 0.0
    %292 = vmatpush.msra.mxu0 0.0
    %293 = vmatpush.msra.mxu0 0.0
    %294 = vmatpush.msra.mxu0 0.0
    %295 = vmatpush.msra.mxu0 0.0
    %296 = vmatpush.msra.mxu0 %v258
    %297 = vmatpush.msra.mxu0 %v256
    %298 = vmatpush.msra.mxu0 %v254
    %299 = vmatmul.f32.gmra.mxu0 %v261
    %v300 = vpop.f32.mrf.mxu0
    %v301 = vadd.f32 0.0, %v300
    %302 = vdwg.mxu0
    %v303 = vadd.f32 %v230, %v281
    %v304 = vadd.f32 %v250, %v301
    %v305 = vld [vmem:[#allocation8] sm:$0xff]
    %v306 = vld [vmem:[#allocation14] sm:$0xff]
    %v307 = vld [vmem:[#allocation14 + $0x8] sm:$0xff]
    %v308 = vld [vmem:[#allocation14 + $0x10] sm:$0xff]
    %v309 = vld [vmem:[#allocation14 + $0x18] sm:$0xff]
    %v310 = vld [vmem:[#allocation14 + $0x20] sm:$0xff]
    %v311 = vld [vmem:[#allocation14 + $0x28] sm:$0xff]
    %v313 = vsel %vm259, %v305, 0
    %315 = vmatpush.msra.mxu0 0.0
    %316 = vmatpush.msra.mxu0 0.0
    %317 = vmatpush.msra.mxu0 0.0
    %318 = vmatpush.msra.mxu0 0.0
    %319 = vmatpush.msra.mxu0 0.0
    %320 = vmatpush.msra.mxu0 0.0
    %321 = vmatpush.msra.mxu0 0.0
    %322 = vmatpush.msra.mxu0 0.0
    %323 = vmatpush.msra.mxu0 0.0
    %324 = vmatpush.msra.mxu0 0.0
    %325 = vmatpush.msra.mxu0 0.0
    %326 = vmatpush.msra.mxu0 0.0
    %327 = vmatpush.msra.mxu0 0.0
    %328 = vmatpush.msra.mxu0 %v310
    %329 = vmatpush.msra.mxu0 %v308
    %330 = vmatpush.msra.mxu0 %v306
    %331 = vmatmul.f32.gmra.mxu0 %v313
    %v332 = vpop.f32.mrf.mxu0
    %v333 = vadd.f32 0.0, %v332
    %334 = vdwg.mxu0
    %335 = vmatpush.msra.mxu0 0.0
    %336 = vmatpush.msra.mxu0 0.0
    %337 = vmatpush.msra.mxu0 0.0
    %338 = vmatpush.msra.mxu0 0.0
    %339 = vmatpush.msra.mxu0 0.0
    %340 = vmatpush.msra.mxu0 0.0
    %341 = vmatpush.msra.mxu0 0.0
    %342 = vmatpush.msra.mxu0 0.0
    %343 = vmatpush.msra.mxu0 0.0
    %344 = vmatpush.msra.mxu0 0.0
    %345 = vmatpush.msra.mxu0 0.0
    %346 = vmatpush.msra.mxu0 0.0
    %347 = vmatpush.msra.mxu0 0.0
    %348 = vmatpush.msra.mxu0 %v311
    %349 = vmatpush.msra.mxu0 %v309
    %350 = vmatpush.msra.mxu0 %v307
    %351 = vmatmul.f32.gmra.mxu0 %v313
    %v352 = vpop.f32.mrf.mxu0
    %v353 = vadd.f32 0.0, %v352
    %354 = vdwg.mxu0
    %v355 = vadd.f32 %v303, %v333
    %v356 = vadd.f32 %v304, %v353
    %v357 = vld [vmem:[%s8] sm:$0x3]
    %v359 = vperm.slane %v357, 0
    %v360 = vperm.slane %v357, 1
    %v363 = vadd.f32 %v355, %v359
    %v364 = vadd.f32 %v356, %v360
    %v365 = vlaneseq
    %v366 = vand.u32 %v365, 127
    %v367 = vadd.s32 %v366, 128
    %vm368 = vcmp.lt.s32.totalorder %v366, 64
    %vm369 = vcmp.lt.s32.totalorder %v367, 64
    %v370 = vxor.u32 %v363, 2147483648
    %v371 = vxor.u32 %v364, 2147483648
    %v372 = vmul.f32 %v370, 1.442695
    %v373 = vpow.pop %v372
    %v374 = vmul.f32 %v371, 1.442695
    %v375 = vpow.pop %v374
    %v376 = vadd.f32 %v373, 1.0
    %v377 = vadd.f32 %v375, 1.0
    %v378 = vrcp.pop %v376
    %v379 = vmul.f32 %v376, %v378
    %v380 = vsub.f32 1.0, %v379
    %v381 = vmul.f32 %v378, %v380
    %v382 = vadd.f32 %v378, %v381
    %vm383 = vweird.f32 %v376
    %vm384 = vweird.f32 %v378
    %vm385 = vmor %vm383, %vm384
    %v386 = vsel %vm385, %v378, %v382
    %v387 = vand.u32 2147483647, %v376
    %vm388 = vcmp.eq.f32.partialorder %v387, 8.507059e+37
    %v389 = vand.u32 %v376, 2147483648
    %v390 = vor.u32 1.1754944e-38, %v389
    %v391 = vsel %vm388, %v390, %v386
    %v392 = vmul.f32 1.0, %v391
    %v393 = vrcp.pop %v377
    %v394 = vmul.f32 %v377, %v393
    %v395 = vsub.f32 1.0, %v394
    %v396 = vmul.f32 %v393, %v395
    %v397 = vadd.f32 %v393, %v396
    %vm398 = vweird.f32 %v377
    %vm399 = vweird.f32 %v393
    %vm400 = vmor %vm398, %vm399
    %v401 = vsel %vm400, %v393, %v397
    %v402 = vand.u32 2147483647, %v377
    %vm403 = vcmp.eq.f32.partialorder %v402, 8.507059e+37
    %v404 = vand.u32 %v377, 2147483648
    %v405 = vor.u32 1.1754944e-38, %v404
    %v406 = vsel %vm403, %v405, %v401
    %v407 = vmul.f32 1.0, %v406
    %v408 = vsel %vm368, %v392, %v363
    %v409 = vsel %vm369, %v407, %v364
    %410 = vst [vmem:[#allocation16] sm:$0xff] %v408
    %411 = vst [vmem:[#allocation16 + $0x8] sm:$0xff] %v409
    // Predicated region
    $region70: #{tpu_custom_call.1} parent=1 // pred_check
      _
    $region71: #{tpu_custom_call.1} parent=1 // pred_check_branch
      %413 = sbr.rel (0) target = $region73
    $region72: #{tpu_custom_call.1} parent=1 // pred_region
      %415 = vsyncadd [#allocation4], 0
      %s417 = sshll.u32 [#allocation16], 4
      %s418 = int_to_ptr.vmem [resolvable:$true] %s417
      %s419 = sshll.u32 %s9, 4
      %s420 = int_to_ptr.hbm [resolvable:$true] %s419
      %422 = dma.vmem_to_hbm [thread:$0]  %s418, 256, %s420, [#allocation4]
    $region73: #{tpu_custom_call.1} parent=1 // pred_fallthru
      _
    // Predicated region
    $region74: #{tpu_custom_call.1} parent=1 // pred_check
      _
    $region75: #{tpu_custom_call.1} parent=1 // pred_check_branch
      %424 = sbr.rel (0) target = $region77
    $region76: #{tpu_custom_call.1} parent=1 // pred_region
      %426 = dma.done [#allocation4], 256
    $region77: #{tpu_custom_call.1} parent=1 // pred_fallthru
      _
    %427 = vsyncpa [#allocation3], 1
    %428 = vsyncpa [#allocation6], 1
    %429 = vsyncpa [#allocation9], 1
    %430 = vsyncpa [#allocation12], 1
    %431 = vsyncpa [#allocation15], 1
    %432 = vsyncpa [#allocation4], 1

</llo_original>
